<compile_context>
chip_gen: v7x
topology: tpu7x:2x2x1
jax: 0.10.0
libtpu: 0.0.40
codegen_flags: <defaults>
</compile_context>

<pallas_src>
import jax
import jax.numpy as jnp
from jax.experimental import pallas as pl
from jax.experimental.pallas import tpu as pltpu


BN_EPS = 1e-5
_LANE = 128


def _round_up(n, m):
    return ((n + m - 1) // m) * m


def _pad_to(a, shape):
    pads = [(0, t - s) for s, t in zip(a.shape, shape)]
    if all(p == (0, 0) for p in pads):
        return a
    return jnp.pad(a, pads)


def _projection_head_kernel(
    x_ref,      # (B, D_in_p)        f32 or bf16
    w1_ref,     # (D_in_p, D_hid_p)  f32 or bf16
    gb1_ref,    # (2, D_hid_p)  f32  row0 = gamma1 (0 on padded cols), row1 = beta1
    w2_ref,     # (D_hid_p, D_out_p) f32 or bf16
    gb2_ref,    # (2, D_out_p)  f32  row0 = gamma2 (0 on padded cols), row1 = beta2
    o_ref,      # (B, D_out_p)  f32
):
    # NOTE: assumes the batch dimension is NOT padded (inv_b uses the ref shape).
    inv_b = 1.0 / x_ref.shape[0]

    # ---- linear1 (bias elided: cancelled by BN mean subtraction) ----
    h = jnp.dot(x_ref[...], w1_ref[...], preferred_element_type=jnp.float32)

    # ---- bn1 folded into one fused scale/shift (single reduction pass) ----
    mean1 = jnp.sum(h, axis=0, keepdims=True) * inv_b
    ex2_1 = jnp.sum(h * h, axis=0, keepdims=True) * inv_b
    var1 = jnp.maximum(ex2_1 - mean1 * mean1, 0.0)   # cancellation guard
    gb1 = gb1_ref[...]
    scale1 = gb1[0:1, :] * jax.lax.rsqrt(var1 + BN_EPS)
    shift1 = gb1[1:2, :] - mean1 * scale1

    # ---- bn1 apply + relu (one mul + add + max per element) ----
    h = jnp.maximum(h * scale1 + shift1, 0.0)

    # ---- linear2 (bias elided) ----
    y = jnp.dot(h.astype(w2_ref.dtype), w2_ref[...],
                preferred_element_type=jnp.float32)

    # ---- bn2 folded into one fused scale/shift ----
    mean2 = jnp.sum(y, axis=0, keepdims=True) * inv_b
    ex2_2 = jnp.sum(y * y, axis=0, keepdims=True) * inv_b
    var2 = jnp.maximum(ex2_2 - mean2 * mean2, 0.0)
    gb2 = gb2_ref[...]
    scale2 = gb2[0:1, :] * jax.lax.rsqrt(var2 + BN_EPS)
    shift2 = gb2[1:2, :] - mean2 * scale2

    # Lane-dense store: D_out was padded to a multiple of 128 at prepare time.
    o_ref[...] = (y * scale2 + shift2).astype(o_ref.dtype)


def prepare_params(params, *, use_bf16_mxu=False):
    """One-time layout work: zero-pad feature dims to lane width, pack
    gamma/beta pairs, optionally cast MXU operands to bf16 in HBM.
    Padded gamma columns are 0, so padded features normalize to exactly 0."""
    d_in, d_hid = params["w1"].shape
    d_out = params["w2"].shape[1]
    d_in_p, d_hid_p, d_out_p = (_round_up(d, _LANE) for d in (d_in, d_hid, d_out))

    mxu_dtype = jnp.bfloat16 if use_bf16_mxu else jnp.float32

    w1_p = _pad_to(params["w1"], (d_in_p, d_hid_p)).astype(mxu_dtype)
    w2_p = _pad_to(params["w2"], (d_hid_p, d_out_p)).astype(mxu_dtype)
    gb1 = jnp.concatenate(
        [_pad_to(params["g1"], (1, d_hid_p)),
         _pad_to(params["beta1"], (1, d_hid_p))], axis=0).astype(jnp.float32)
    gb2 = jnp.concatenate(
        [_pad_to(params["g2"], (1, d_out_p)),
         _pad_to(params["beta2"], (1, d_out_p))], axis=0).astype(jnp.float32)

    return {
        "w1": w1_p, "gb1": gb1, "w2": w2_p, "gb2": gb2,
        "dims": (d_in, d_hid, d_out),
        "pdims": (d_in_p, d_hid_p, d_out_p),
        "mxu_dtype": mxu_dtype,
        "use_bf16_mxu": use_bf16_mxu,
    }


def projection_head_forward(x, prep, *, return_padded=False):
    """Fused projection-head forward.

    x:    (B, input_dim) float32 (batch dim must not be padded)
    prep: output of `prepare_params`
    returns (B, output_dim) float32, or the lane-dense (B, output_dim_padded)
    slab when return_padded=True (skips the post-kernel slice copy).
    """
    B, d_in = x.shape
    d_in_p, d_hid_p, d_out_p = prep["pdims"]
    assert d_in == prep["dims"][0]

    x_p = _pad_to(x, (B, d_in_p)).astype(prep["mxu_dtype"])

    operands = (x_p, prep["w1"], prep["gb1"], prep["w2"], prep["gb2"])
    out_bytes = B * d_out_p * 4
    in_bytes = sum(int(a.size) * a.dtype.itemsize for a in operands)
    # Generous headroom over the raw operand footprint; well under the 64 MiB
    # physical VMEM of v7x for projection-head sizes.
    vmem_limit = min(96 << 20, max(8 << 20, 2 * (in_bytes + out_bytes)))

    vmem = pl.BlockSpec(memory_space=pltpu.MemorySpace.VMEM)

    out_p = pl.pallas_call(
        _projection_head_kernel,
        out_shape=jax.ShapeDtypeStruct((B, d_out_p), jnp.float32),
        in_specs=[vmem] * 5,
        out_specs=vmem,
        compiler_params=pltpu.CompilerParams(vmem_limit_bytes=vmem_limit),
    )(*operands)

    if return_padded:
        return out_p
    return out_p[:, :prep["dims"][2]]


def init_params(key, input_dim, hidden_dim, output_dim):
    """Deterministic parameter init (PyTorch-style uniform bounds for Linear,
    ones/zeros for BatchNorm affine params)."""
    k1, k2, k3, k4 = jax.random.split(key, 4)
    bound1 = 1.0 / jnp.sqrt(input_dim)
    bound2 = 1.0 / jnp.sqrt(hidden_dim)
    return {
        # stored as (in, out): transpose of PyTorch's (out, in) Linear weight
        "w1": jax.random.uniform(k1, (input_dim, hidden_dim), jnp.float32,
                                 -bound1, bound1),
        "b1": jax.random.uniform(k2, (1, hidden_dim), jnp.float32,
                                 -bound1, bound1),
        "g1": jnp.ones((1, hidden_dim), jnp.float32),
        "beta1": jnp.zeros((1, hidden_dim), jnp.float32),
        "w2": jax.random.uniform(k3, (hidden_dim, output_dim), jnp.float32,
                                 -bound2, bound2),
        "b2": jax.random.uniform(k4, (1, output_dim), jnp.float32,
                                 -bound2, bound2),
        "g2": jnp.ones((1, output_dim), jnp.float32),
        "beta2": jnp.zeros((1, output_dim), jnp.float32),
    }


if __name__ == "__main__":
    B, INPUT_DIM, HIDDEN_DIM, OUTPUT_DIM = 8, 32, 64, 16
    USE_BF16_MXU = False  # set True on v5e/v6e/v7x to halve weight DMA bytes

    key = jax.random.PRNGKey(0)
    kx, kp = jax.random.split(key)
    x = jax.random.normal(kx, (B, INPUT_DIM), jnp.float32)
    raw_params = init_params(kp, INPUT_DIM, HIDDEN_DIM, OUTPUT_DIM)
    prep = prepare_params(raw_params, use_bf16_mxu=USE_BF16_MXU)

    out = projection_head_forward(x, prep)
    jax.block_until_ready(out)

    # Reference keeps the PyTorch-faithful math (including the Linear biases,
    # which training-mode BatchNorm cancels) to verify the optimized kernel.
    def ref(x, p):
        h = x @ p["w1"] + p["b1"]
        m = h.mean(0, keepdims=True)
        v = ((h - m) ** 2).mean(0, keepdims=True)
        h = (h - m) / jnp.sqrt(v + BN_EPS) * p["g1"] + p["beta1"]
        h = jnp.maximum(h, 0.0)
        y = h @ p["w2"] + p["b2"]
        m2 = y.mean(0, keepdims=True)
        v2 = ((y - m2) ** 2).mean(0, keepdims=True)
        return (y - m2) / jnp.sqrt(v2 + BN_EPS) * p["g2"] + p["beta2"]

    expected = ref(x, raw_params)
    assert out.shape == (B, OUTPUT_DIM)
    if USE_BF16_MXU:
        # bf16 MXU inputs: looser tolerance (expected precision difference).
        assert jnp.allclose(out, expected, atol=5e-2, rtol=5e-2)
    else:
        assert jnp.allclose(out, expected, atol=1e-4, rtol=1e-4)

    print("KERNEL_OK")
</pallas_src>

<mosaic_0001>
module attributes {stable_mosaic.version = 11 : i64} {
  func.func @_projection_head_kernel(%arg0: memref<8x128xf32, #tpu.memory_space<vmem>>, %arg1: memref<128x128xf32, #tpu.memory_space<vmem>>, %arg2: memref<2x128xf32, #tpu.memory_space<vmem>>, %arg3: memref<128x128xf32, #tpu.memory_space<vmem>>, %arg4: memref<2x128xf32, #tpu.memory_space<vmem>>, %arg5: memref<8x128xf32, #tpu.memory_space<vmem>>) attributes {dimension_semantics = [], scalar_prefetch = 0 : i64, scratch_operands = 0 : i64, tpu.core_type = #tpu.core_type<tc>} {
    %c0 = arith.constant 0 : index
    %c0_0 = arith.constant 0 : index
    %0 = vector.load %arg0[%c0, %c0_0] : memref<8x128xf32, #tpu.memory_space<vmem>>, vector<8x128xf32>
    %c0_1 = arith.constant 0 : index
    %c0_2 = arith.constant 0 : index
    %1 = vector.load %arg1[%c0_1, %c0_2] : memref<128x128xf32, #tpu.memory_space<vmem>>, vector<128x128xf32>
    %cst = arith.constant dense<0.000000e+00> : vector<8x128xf32>
    %2 = tpu.matmul %0, %1, %cst {dimension_numbers = #tpu.dot_dimension_numbers<[1], [0], [0], [1], [0, 0, 1, 1], [], []>} : vector<8x128xf32>, vector<128x128xf32>, vector<8x128xf32> -> vector<8x128xf32>
    %cst_3 = arith.constant dense<0.000000e+00> : vector<128xf32>
    %3 = vector.multi_reduction <add>, %2, %cst_3 [0] : vector<8x128xf32> to vector<128xf32>
    %4 = vector.shape_cast %3 : vector<128xf32> to vector<1x128xf32>
    %cst_4 = arith.constant 1.250000e-01 : f32
    %5 = vector.broadcast %cst_4 : f32 to vector<1x128xf32>
    %6 = arith.mulf %4, %5 : vector<1x128xf32>
    %7 = arith.mulf %2, %2 : vector<8x128xf32>
    %cst_5 = arith.constant dense<0.000000e+00> : vector<128xf32>
    %8 = vector.multi_reduction <add>, %7, %cst_5 [0] : vector<8x128xf32> to vector<128xf32>
    %9 = vector.shape_cast %8 : vector<128xf32> to vector<1x128xf32>
    %cst_6 = arith.constant 1.250000e-01 : f32
    %10 = vector.broadcast %cst_6 : f32 to vector<1x128xf32>
    %11 = arith.mulf %9, %10 : vector<1x128xf32>
    %12 = arith.mulf %6, %6 : vector<1x128xf32>
    %13 = arith.subf %11, %12 : vector<1x128xf32>
    %cst_7 = arith.constant 0.000000e+00 : f32
    %14 = vector.broadcast %cst_7 : f32 to vector<1x128xf32>
    %15 = arith.maximumf %13, %14 : vector<1x128xf32>
    %c0_8 = arith.constant 0 : index
    %c0_9 = arith.constant 0 : index
    %16 = vector.load %arg2[%c0_8, %c0_9] : memref<2x128xf32, #tpu.memory_space<vmem>>, vector<2x128xf32>
    %17 = vector.extract_strided_slice %16 {offsets = [0, 0], sizes = [1, 128], strides = [1, 1]} : vector<2x128xf32> to vector<1x128xf32>
    %cst_10 = arith.constant 9.99999974E-6 : f32
    %18 = vector.broadcast %cst_10 : f32 to vector<1x128xf32>
    %19 = arith.addf %15, %18 : vector<1x128xf32>
    %20 = math.rsqrt %19 : vector<1x128xf32>
    %21 = arith.mulf %17, %20 : vector<1x128xf32>
    %22 = vector.extract_strided_slice %16 {offsets = [1, 0], sizes = [1, 128], strides = [1, 1]} : vector<2x128xf32> to vector<1x128xf32>
    %23 = arith.mulf %6, %21 : vector<1x128xf32>
    %24 = arith.subf %22, %23 : vector<1x128xf32>
    %25 = vector.broadcast %21 : vector<1x128xf32> to vector<8x128xf32>
    %26 = arith.mulf %2, %25 : vector<8x128xf32>
    %27 = vector.broadcast %24 : vector<1x128xf32> to vector<8x128xf32>
    %28 = arith.addf %26, %27 : vector<8x128xf32>
    %cst_11 = arith.constant 0.000000e+00 : f32
    %29 = vector.broadcast %cst_11 : f32 to vector<8x128xf32>
    %30 = arith.maximumf %28, %29 : vector<8x128xf32>
    %c0_12 = arith.constant 0 : index
    %c0_13 = arith.constant 0 : index
    %31 = vector.load %arg3[%c0_12, %c0_13] : memref<128x128xf32, #tpu.memory_space<vmem>>, vector<128x128xf32>
    %cst_14 = arith.constant dense<0.000000e+00> : vector<8x128xf32>
    %32 = tpu.matmul %30, %31, %cst_14 {dimension_numbers = #tpu.dot_dimension_numbers<[1], [0], [0], [1], [0, 0, 1, 1], [], []>} : vector<8x128xf32>, vector<128x128xf32>, vector<8x128xf32> -> vector<8x128xf32>
    %cst_15 = arith.constant dense<0.000000e+00> : vector<128xf32>
    %33 = vector.multi_reduction <add>, %32, %cst_15 [0] : vector<8x128xf32> to vector<128xf32>
    %34 = vector.shape_cast %33 : vector<128xf32> to vector<1x128xf32>
    %cst_16 = arith.constant 1.250000e-01 : f32
    %35 = vector.broadcast %cst_16 : f32 to vector<1x128xf32>
    %36 = arith.mulf %34, %35 : vector<1x128xf32>
    %37 = arith.mulf %32, %32 : vector<8x128xf32>
    %cst_17 = arith.constant dense<0.000000e+00> : vector<128xf32>
    %38 = vector.multi_reduction <add>, %37, %cst_17 [0] : vector<8x128xf32> to vector<128xf32>
    %39 = vector.shape_cast %38 : vector<128xf32> to vector<1x128xf32>
    %cst_18 = arith.constant 1.250000e-01 : f32
    %40 = vector.broadcast %cst_18 : f32 to vector<1x128xf32>
    %41 = arith.mulf %39, %40 : vector<1x128xf32>
    %42 = arith.mulf %36, %36 : vector<1x128xf32>
    %43 = arith.subf %41, %42 : vector<1x128xf32>
    %cst_19 = arith.constant 0.000000e+00 : f32
    %44 = vector.broadcast %cst_19 : f32 to vector<1x128xf32>
    %45 = arith.maximumf %43, %44 : vector<1x128xf32>
    %c0_20 = arith.constant 0 : index
    %c0_21 = arith.constant 0 : index
    %46 = vector.load %arg4[%c0_20, %c0_21] : memref<2x128xf32, #tpu.memory_space<vmem>>, vector<2x128xf32>
    %47 = vector.extract_strided_slice %46 {offsets = [0, 0], sizes = [1, 128], strides = [1, 1]} : vector<2x128xf32> to vector<1x128xf32>
    %cst_22 = arith.constant 9.99999974E-6 : f32
    %48 = vector.broadcast %cst_22 : f32 to vector<1x128xf32>
    %49 = arith.addf %45, %48 : vector<1x128xf32>
    %50 = math.rsqrt %49 : vector<1x128xf32>
    %51 = arith.mulf %47, %50 : vector<1x128xf32>
    %52 = vector.extract_strided_slice %46 {offsets = [1, 0], sizes = [1, 128], strides = [1, 1]} : vector<2x128xf32> to vector<1x128xf32>
    %53 = arith.mulf %36, %51 : vector<1x128xf32>
    %54 = arith.subf %52, %53 : vector<1x128xf32>
    %55 = vector.broadcast %51 : vector<1x128xf32> to vector<8x128xf32>
    %56 = arith.mulf %32, %55 : vector<8x128xf32>
    %57 = vector.broadcast %54 : vector<1x128xf32> to vector<8x128xf32>
    %58 = arith.addf %56, %57 : vector<8x128xf32>
    %c0_23 = arith.constant 0 : index
    %c0_24 = arith.constant 0 : index
    %59 = vector.load %arg5[%c0_23, %c0_24] : memref<8x128xf32, #tpu.memory_space<vmem>>, vector<8x128xf32>
    tpu.vector_store %arg5[%c0_23, %c0_24], %58 {strides = array<i32>} : memref<8x128xf32, #tpu.memory_space<vmem>>, vector<8x128xf32>,
    return
  }
}

</mosaic_0001>

<llo_original>
// kernel: tpu_custom_call.1
$region0: #{tpu_custom_call.1}
  #allocation0 [shape = 'u32[]', space=smem, size = 0x4, offset = 0x4, fixed_abs, tag = 'smem constant byte address 0x4 - core index']
  #allocation1 [shape = 'u32[144,128]{1,0:T(1,128)}', space=vmem, size = 0x12000, scoped, tag = 'internal scratch']
  %s0 = inlined_call_operand.hbm [shape: f32[8,128], index: 0, kind: input, shape index: {}]
  %s1 = inlined_call_operand.hbm [shape: f32[128,128], index: 1, kind: input, shape index: {}]
  %s2 = inlined_call_operand.vmem [shape: f32[2,128], index: 2, kind: input, shape index: {}]
  %s3 = inlined_call_operand.hbm [shape: f32[128,128], index: 3, kind: input, shape index: {}]
  %s4 = inlined_call_operand.vmem [shape: f32[2,128], index: 4, kind: input, shape index: {}]
  %s5 = inlined_call_operand.hbm [shape: f32[8,128], index: 5, kind: output, shape index: {}]
  %s6 = sld [smem:[#allocation0]]
  $region42: #{tpu_custom_call.1} parent=0
    _
  %s8 = ssub.s32 1, %s6
  %s9 = scalar_select 0, %s8, %s6
  $region1: #{tpu_custom_call.1} parent=0
    #allocation2 [shape = 'u8[4096]{0}', space=vmem, size = 0x1000, scoped, tag = 'input window, operand 0, single buffered']
    #allocation3 [shape = 's32[1]{0}', space=sflag, size = 0x4, scoped, tag = 'scoped memory for tpu_custom_call.1']
    #allocation4 [shape = 's32[1]{0}', space=sflag, size = 0x4, scoped, tag = 'scoped memory for tpu_custom_call.1']
    #allocation5 [shape = 'u8[65536]{0}', space=vmem, size = 0x10000, scoped, tag = 'input window, operand 1, single buffered']
    #allocation6 [shape = 's32[1]{0}', space=sflag, size = 0x4, scoped, tag = 'scoped memory for tpu_custom_call.1']
    #allocation7 [shape = 'u8[65536]{0}', space=vmem, size = 0x10000, scoped, tag = 'input window, operand 3, single buffered']
    #allocation8 [shape = 'u8[4096]{0}', space=vmem, size = 0x1000, scoped, tag = 'output window, operand 0, single buffered']
    %10 = vsyncpa [#allocation3], 0
    %11 = vsyncpa [#allocation6], 0
    %12 = vsyncpa [#allocation4], 0
    // Predicated region
    $region2: #{tpu_custom_call.1} parent=1 // pred_check
      _
    $region3: #{tpu_custom_call.1} parent=1 // pred_check_branch
      %14 = sbr.rel (0) target = $region5
    $region4: #{tpu_custom_call.1} parent=1 // pred_region
      %s16 = ssub.s32 128, 128
      %17 = vsyncadd [#allocation3], %s16
      %s19 = sshll.u32 [#allocation2], 4
      %s20 = int_to_ptr.vmem [resolvable:$true] %s19
      %22 = dma.hbm_to_vmem [thread:$0]  %s0, 128, %s20, [#allocation3]
    $region5: #{tpu_custom_call.1} parent=1 // pred_fallthru
      _
    // Predicated region
    $region6: #{tpu_custom_call.1} parent=1 // pred_check
      _
    $region7: #{tpu_custom_call.1} parent=1 // pred_check_branch
      %24 = sbr.rel (0) target = $region9
    $region8: #{tpu_custom_call.1} parent=1 // pred_region
      %s26 = ssub.s32 2048, 2048
      %27 = vsyncadd [#allocation6], %s26
      %s28 = sshll.u32 [#allocation5], 4
      %s29 = int_to_ptr.vmem [resolvable:$true] %s28
      %34 = dma.hbm_to_vmem [thread:$0]  %s1, 2048, %s29, [#allocation6], 128, 128, 8
    $region9: #{tpu_custom_call.1} parent=1 // pred_fallthru
      _
    // Predicated region
    $region10: #{tpu_custom_call.1} parent=1 // pred_check
      _
    $region11: #{tpu_custom_call.1} parent=1 // pred_check_branch
      %36 = sbr.rel (0) target = $region13
    $region12: #{tpu_custom_call.1} parent=1 // pred_region
      _
    $region13: #{tpu_custom_call.1} parent=1 // pred_fallthru
      _
    // Predicated region
    $region14: #{tpu_custom_call.1} parent=1 // pred_check
      _
    $region15: #{tpu_custom_call.1} parent=1 // pred_check_branch
      %38 = sbr.rel (0) target = $region17
    $region16: #{tpu_custom_call.1} parent=1 // pred_region
      %s40 = ssub.s32 2048, 2048
      %41 = vsyncadd [#allocation6], %s40
      %s42 = sshll.u32 [#allocation7], 4
      %s43 = int_to_ptr.vmem [resolvable:$true] %s42
      %48 = dma.hbm_to_vmem [thread:$0]  %s3, 2048, %s43, [#allocation6], 128, 128, 8
    $region17: #{tpu_custom_call.1} parent=1 // pred_fallthru
      _
    // Predicated region
    $region18: #{tpu_custom_call.1} parent=1 // pred_check
      _
    $region19: #{tpu_custom_call.1} parent=1 // pred_check_branch
      %50 = sbr.rel (0) target = $region21
    $region20: #{tpu_custom_call.1} parent=1 // pred_region
      _
    $region21: #{tpu_custom_call.1} parent=1 // pred_fallthru
      _
    // Predicated region
    $region22: #{tpu_custom_call.1} parent=1 // pred_check
      _
    $region23: #{tpu_custom_call.1} parent=1 // pred_check_branch
      %52 = sbr.rel (0) target = $region25
    $region24: #{tpu_custom_call.1} parent=1 // pred_region
      %53 = dma.done [#allocation3], 128
    $region25: #{tpu_custom_call.1} parent=1 // pred_fallthru
      _
    // Predicated region
    $region26: #{tpu_custom_call.1} parent=1 // pred_check
      _
    $region27: #{tpu_custom_call.1} parent=1 // pred_check_branch
      %55 = sbr.rel (0) target = $region29
    $region28: #{tpu_custom_call.1} parent=1 // pred_region
      %56 = dma.done [#allocation6], 2048
    $region29: #{tpu_custom_call.1} parent=1 // pred_fallthru
      _
    // Predicated region
    $region30: #{tpu_custom_call.1} parent=1 // pred_check
      _
    $region31: #{tpu_custom_call.1} parent=1 // pred_check_branch
      %58 = sbr.rel (0) target = $region33
    $region32: #{tpu_custom_call.1} parent=1 // pred_region
      %59 = dma.done [#allocation6], 2048
    $region33: #{tpu_custom_call.1} parent=1 // pred_fallthru
      _
    %v60 = vld [vmem:[#allocation2] sm:$0xff]
    %v61 = vld [vmem:[#allocation5] sm:$0xff]
    %v62 = vld [vmem:[#allocation5 + $0x8] sm:$0xff]
    %v63 = vld [vmem:[#allocation5 + $0x10] sm:$0xff]
    %v64 = vld [vmem:[#allocation5 + $0x18] sm:$0xff]
    %v65 = vld [vmem:[#allocation5 + $0x20] sm:$0xff]
    %v66 = vld [vmem:[#allocation5 + $0x28] sm:$0xff]
    %v67 = vld [vmem:[#allocation5 + $0x30] sm:$0xff]
    %v68 = vld [vmem:[#allocation5 + $0x38] sm:$0xff]
    %v69 = vld [vmem:[#allocation5 + $0x40] sm:$0xff]
    %v70 = vld [vmem:[#allocation5 + $0x48] sm:$0xff]
    %v71 = vld [vmem:[#allocation5 + $0x50] sm:$0xff]
    %v72 = vld [vmem:[#allocation5 + $0x58] sm:$0xff]
    %v73 = vld [vmem:[#allocation5 + $0x60] sm:$0xff]
    %v74 = vld [vmem:[#allocation5 + $0x68] sm:$0xff]
    %v75 = vld [vmem:[#allocation5 + $0x70] sm:$0xff]
    %v76 = vld [vmem:[#allocation5 + $0x78] sm:$0xff]
    %77 = vmatprep.subr.mxu0 0.0
    %78 = vmatpush1.msra.mxu0 %v61
    %79 = vmatprep.subr.mxu0 0.0
    %80 = vmatpush1.msra.mxu0 %v62
    %81 = vmatprep.subr.mxu0 0.0
    %82 = vmatpush1.msra.mxu0 %v63
    %83 = vmatprep.subr.mxu0 0.0
    %84 = vmatpush1.msra.mxu0 %v64
    %85 = vmatprep.subr.mxu0 0.0
    %86 = vmatpush1.msra.mxu0 %v65
    %87 = vmatprep.subr.mxu0 0.0
    %88 = vmatpush1.msra.mxu0 %v66
    %89 = vmatprep.subr.mxu0 0.0
    %90 = vmatpush1.msra.mxu0 %v67
    %91 = vmatprep.subr.mxu0 0.0
    %92 = vmatpush1.msra.mxu0 %v68
    %93 = vmatprep.subr.mxu0 0.0
    %94 = vmatpush1.msra.mxu0 %v69
    %95 = vmatprep.subr.mxu0 0.0
    %96 = vmatpush1.msra.mxu0 %v70
    %97 = vmatprep.subr.mxu0 0.0
    %98 = vmatpush1.msra.mxu0 %v71
    %99 = vmatprep.subr.mxu0 0.0
    %100 = vmatpush1.msra.mxu0 %v72
    %101 = vmatprep.subr.mxu0 0.0
    %102 = vmatpush1.msra.mxu0 %v73
    %103 = vmatprep.subr.mxu0 0.0
    %104 = vmatpush1.msra.mxu0 %v74
    %105 = vmatprep.subr.mxu0 0.0
    %106 = vmatpush1.msra.mxu0 %v75
    %107 = vmatprep.subr.mxu0 0.0
    %108 = vmatpush1.msra.mxu0 %v76
    %109 = vmatprep.subr.mxu0 0.0
    %110 = vmatpush1.msra.mxu0 0.0
    %111 = vmatprep.subr.mxu0 0.0
    %112 = vmatpush1.msra.mxu0 0.0
    %113 = vmatprep.subr.mxu0 0.0
    %114 = vmatpush1.msra.mxu0 0.0
    %115 = vmatprep.subr.mxu0 0.0
    %116 = vmatpush1.msra.mxu0 0.0
    %117 = vmatprep.subr.mxu0 0.0
    %118 = vmatpush1.msra.mxu0 0.0
    %119 = vmatprep.subr.mxu0 0.0
    %120 = vmatpush1.msra.mxu0 0.0
    %121 = vmatprep.subr.mxu0 0.0
    %122 = vmatpush1.msra.mxu0 0.0
    %123 = vmatprep.subr.mxu0 0.0
    %124 = vmatpush1.msra.mxu0 0.0
    %125 = vmatprep.subr.mxu0 0.0
    %126 = vmatpush1.msra.mxu0 0.0
    %127 = vmatprep.subr.mxu0 0.0
    %128 = vmatpush1.msra.mxu0 0.0
    %129 = vmatprep.subr.mxu0 0.0
    %130 = vmatpush1.msra.mxu0 0.0
    %131 = vmatprep.subr.mxu0 0.0
    %132 = vmatpush1.msra.mxu0 0.0
    %133 = vmatprep.subr.mxu0 0.0
    %134 = vmatpush1.msra.mxu0 0.0
    %135 = vmatprep.subr.mxu0 0.0
    %136 = vmatpush1.msra.mxu0 0.0
    %137 = vmatprep.subr.mxu0 0.0
    %138 = vmatpush1.msra.mxu0 0.0
    %139 = vmatprep.subr.mxu0 0.0
    %140 = vmatpush1.msra.mxu0 0.0
    %141 = vmatprep.mubr.f32.mxu0 0.0
    %142 = vmatmul.mubr.f32.gmra.mrb[0].mxu0 %v60
    %v143 = vpop.f32.mrb[0].mxu0
    %v144 = vadd.f32 0.0, %v143
    %v145 = vpop.f32.mrb[0].mxu0
    %146 = vdwg.mxu0
    %v147 = vrot.slane %v144, 4
    %v148 = vadd.f32 %v144, %v147
    %v149 = vrot.slane %v148, 2
    %v150 = vadd.f32 %v148, %v149
    %v151 = vrot.slane %v150, 1
    %v152 = vadd.f32 %v150, %v151
    %v153 = vmul.f32 %v152, 0.125
    %v154 = vmul.f32 %v144, %v144
    %v155 = vrot.slane %v154, 4
    %v156 = vadd.f32 %v154, %v155
    %v157 = vrot.slane %v156, 2
    %v158 = vadd.f32 %v156, %v157
    %v159 = vrot.slane %v158, 1
    %v160 = vadd.f32 %v158, %v159
    %v161 = vmul.f32 %v160, 0.125
    %v162 = vmul.f32 %v153, %v153
    %v163 = vsub.f32 %v161, %v162
    %v164 = vmax.f32 %v163, 0.0
    %v165 = vld [vmem:[%s2] sm:$0x3]
    %v166 = vadd.f32 %v164, 1e-05
    %v167 = vrsqrt.pop %v166
    %v168 = vmul.f32 %v165, %v167
    %v169 = vmul.f32 %v153, %v168
    %v171 = vrot.slane %v169, 7
    %v173 = vsub.f32 %v165, %v171
    %v174 = vlaneseq
    %v175 = vshrl.u32 %v174, 7
    %v176 = vsub.s32 0, %v175
    %v177 = vrot.slane %v168, %v176
    %v178 = vmul.f32 %v144, %v177
    %v179 = vlaneseq
    %v180 = vshrl.u32 %v179, 7
    %v181 = vsub.s32 1, %v180
    %v182 = vrot.slane %v173, %v181
    %v183 = vadd.f32 %v178, %v182
    %v184 = vmax.f32 %v183, 0.0
    %v185 = vld [vmem:[#allocation7] sm:$0xff]
    %v186 = vld [vmem:[#allocation7 + $0x8] sm:$0xff]
    %v187 = vld [vmem:[#allocation7 + $0x10] sm:$0xff]
    %v188 = vld [vmem:[#allocation7 + $0x18] sm:$0xff]
    %v189 = vld [vmem:[#allocation7 + $0x20] sm:$0xff]
    %v190 = vld [vmem:[#allocation7 + $0x28] sm:$0xff]
    %v191 = vld [vmem:[#allocation7 + $0x30] sm:$0xff]
    %v192 = vld [vmem:[#allocation7 + $0x38] sm:$0xff]
    %v193 = vld [vmem:[#allocation7 + $0x40] sm:$0xff]
    %v194 = vld [vmem:[#allocation7 + $0x48] sm:$0xff]
    %v195 = vld [vmem:[#allocation7 + $0x50] sm:$0xff]
    %v196 = vld [vmem:[#allocation7 + $0x58] sm:$0xff]
    %v197 = vld [vmem:[#allocation7 + $0x60] sm:$0xff]
    %v198 = vld [vmem:[#allocation7 + $0x68] sm:$0xff]
    %v199 = vld [vmem:[#allocation7 + $0x70] sm:$0xff]
    %v200 = vld [vmem:[#allocation7 + $0x78] sm:$0xff]
    %201 = vmatprep.subr.mxu0 0.0
    %202 = vmatpush1.msra.mxu0 %v185
    %203 = vmatprep.subr.mxu0 0.0
    %204 = vmatpush1.msra.mxu0 %v186
    %205 = vmatprep.subr.mxu0 0.0
    %206 = vmatpush1.msra.mxu0 %v187
    %207 = vmatprep.subr.mxu0 0.0
    %208 = vmatpush1.msra.mxu0 %v188
    %209 = vmatprep.subr.mxu0 0.0
    %210 = vmatpush1.msra.mxu0 %v189
    %211 = vmatprep.subr.mxu0 0.0
    %212 = vmatpush1.msra.mxu0 %v190
    %213 = vmatprep.subr.mxu0 0.0
    %214 = vmatpush1.msra.mxu0 %v191
    %215 = vmatprep.subr.mxu0 0.0
    %216 = vmatpush1.msra.mxu0 %v192
    %217 = vmatprep.subr.mxu0 0.0
    %218 = vmatpush1.msra.mxu0 %v193
    %219 = vmatprep.subr.mxu0 0.0
    %220 = vmatpush1.msra.mxu0 %v194
    %221 = vmatprep.subr.mxu0 0.0
    %222 = vmatpush1.msra.mxu0 %v195
    %223 = vmatprep.subr.mxu0 0.0
    %224 = vmatpush1.msra.mxu0 %v196
    %225 = vmatprep.subr.mxu0 0.0
    %226 = vmatpush1.msra.mxu0 %v197
    %227 = vmatprep.subr.mxu0 0.0
    %228 = vmatpush1.msra.mxu0 %v198
    %229 = vmatprep.subr.mxu0 0.0
    %230 = vmatpush1.msra.mxu0 %v199
    %231 = vmatprep.subr.mxu0 0.0
    %232 = vmatpush1.msra.mxu0 %v200
    %233 = vmatprep.subr.mxu0 0.0
    %234 = vmatpush1.msra.mxu0 0.0
    %235 = vmatprep.subr.mxu0 0.0
    %236 = vmatpush1.msra.mxu0 0.0
    %237 = vmatprep.subr.mxu0 0.0
    %238 = vmatpush1.msra.mxu0 0.0
    %239 = vmatprep.subr.mxu0 0.0
    %240 = vmatpush1.msra.mxu0 0.0
    %241 = vmatprep.subr.mxu0 0.0
    %242 = vmatpush1.msra.mxu0 0.0
    %243 = vmatprep.subr.mxu0 0.0
    %244 = vmatpush1.msra.mxu0 0.0
    %245 = vmatprep.subr.mxu0 0.0
    %246 = vmatpush1.msra.mxu0 0.0
    %247 = vmatprep.subr.mxu0 0.0
    %248 = vmatpush1.msra.mxu0 0.0
    %249 = vmatprep.subr.mxu0 0.0
    %250 = vmatpush1.msra.mxu0 0.0
    %251 = vmatprep.subr.mxu0 0.0
    %252 = vmatpush1.msra.mxu0 0.0
    %253 = vmatprep.subr.mxu0 0.0
    %254 = vmatpush1.msra.mxu0 0.0
    %255 = vmatprep.subr.mxu0 0.0
    %256 = vmatpush1.msra.mxu0 0.0
    %257 = vmatprep.subr.mxu0 0.0
    %258 = vmatpush1.msra.mxu0 0.0
    %259 = vmatprep.subr.mxu0 0.0
    %260 = vmatpush1.msra.mxu0 0.0
    %261 = vmatprep.subr.mxu0 0.0
    %262 = vmatpush1.msra.mxu0 0.0
    %263 = vmatprep.subr.mxu0 0.0
    %264 = vmatpush1.msra.mxu0 0.0
    %265 = vmatprep.mubr.f32.mxu0 0.0
    %266 = vmatmul.mubr.f32.gmra.mrb[0].mxu0 %v184
    %v267 = vpop.f32.mrb[0].mxu0
    %v268 = vadd.f32 0.0, %v267
    %v269 = vpop.f32.mrb[0].mxu0
    %270 = vdwg.mxu0
    %v271 = vrot.slane %v268, 4
    %v272 = vadd.f32 %v268, %v271
    %v273 = vrot.slane %v272, 2
    %v274 = vadd.f32 %v272, %v273
    %v275 = vrot.slane %v274, 1
    %v276 = vadd.f32 %v274, %v275
    %v277 = vmul.f32 %v276, 0.125
    %v278 = vmul.f32 %v268, %v268
    %v279 = vrot.slane %v278, 4
    %v280 = vadd.f32 %v278, %v279
    %v281 = vrot.slane %v280, 2
    %v282 = vadd.f32 %v280, %v281
    %v283 = vrot.slane %v282, 1
    %v284 = vadd.f32 %v282, %v283
    %v285 = vmul.f32 %v284, 0.125
    %v286 = vmul.f32 %v277, %v277
    %v287 = vsub.f32 %v285, %v286
    %v288 = vmax.f32 %v287, 0.0
    %v289 = vld [vmem:[%s4] sm:$0x3]
    %v290 = vadd.f32 %v288, 1e-05
    %v291 = vrsqrt.pop %v290
    %v292 = vmul.f32 %v289, %v291
    %v293 = vmul.f32 %v277, %v292
    %v295 = vrot.slane %v293, 7
    %v297 = vsub.f32 %v289, %v295
    %v298 = vlaneseq
    %v299 = vshrl.u32 %v298, 7
    %v300 = vsub.s32 0, %v299
    %v301 = vrot.slane %v292, %v300
    %v302 = vmul.f32 %v268, %v301
    %v303 = vlaneseq
    %v304 = vshrl.u32 %v303, 7
    %v305 = vsub.s32 1, %v304
    %v306 = vrot.slane %v297, %v305
    %v307 = vadd.f32 %v302, %v306
    %308 = vst [vmem:[#allocation8] sm:$0xff] %v307
    // Predicated region
    $region34: #{tpu_custom_call.1} parent=1 // pred_check
      _
    $region35: #{tpu_custom_call.1} parent=1 // pred_check_branch
      %310 = sbr.rel (0) target = $region37
    $region36: #{tpu_custom_call.1} parent=1 // pred_region
      %s312 = ssub.s32 128, 128
      %313 = vsyncadd [#allocation4], %s312
      %s315 = sshll.u32 [#allocation8], 4
      %s316 = int_to_ptr.vmem [resolvable:$true] %s315
      %318 = dma.vmem_to_hbm [thread:$0]  %s316, 128, %s5, [#allocation4]
    $region37: #{tpu_custom_call.1} parent=1 // pred_fallthru
      _
    // Predicated region
    $region38: #{tpu_custom_call.1} parent=1 // pred_check
      _
    $region39: #{tpu_custom_call.1} parent=1 // pred_check_branch
      %320 = sbr.rel (0) target = $region41
    $region40: #{tpu_custom_call.1} parent=1 // pred_region
      %321 = dma.done [#allocation4], 128
    $region41: #{tpu_custom_call.1} parent=1 // pred_fallthru
      _
    %322 = vsyncpa [#allocation3], 1
    %323 = vsyncpa [#allocation6], 1
    %324 = vsyncpa [#allocation4], 1

</llo_original>
